<compile_context>
chip_gen: v7x
topology: tpu7x:2x2x1
jax: 0.10.0
libtpu: 0.0.40
codegen_flags: <defaults>
</compile_context>

<pallas_src>
import functools

import jax
import jax.numpy as jnp
from jax import lax
from jax.experimental import pallas as pl
from jax.experimental.pallas import tpu as pltpu


# --------------------------- roll direction probe ------------------------------
# The conv taps are implemented as row rotations of the dense activation block.
# pltpu.roll lowers to the XLU rotate; its shift convention is probed once at
# runtime (eagerly, BEFORE any jit tracing) so the tap math is correct under
# either convention.

_ROLL_SIGN = None  # +1: pltpu.roll matches jnp.roll; -1: opposite convention.


def _probe_roll_kernel(x_ref, o_ref):
    o_ref[...] = pltpu.roll(x_ref[...], 1, axis=0)


def detect_roll_sign():
    global _ROLL_SIGN
    if _ROLL_SIGN is None:
        x = lax.broadcasted_iota(jnp.int32, (8, 128), 0)
        y = pl.pallas_call(
            _probe_roll_kernel,
            out_shape=jax.ShapeDtypeStruct((8, 128), jnp.int32))(x)
        # jnp.roll semantics: roll(x, 1)[1] == x[0] == 0.
        _ROLL_SIGN = 1 if int(y[1, 0]) == 0 else -1
    return _ROLL_SIGN


def _shift_rows(x, s, n, sign):
    """Returns y with y[i] = x[(i + s) % n] along axis 0 (XLU rotate)."""
    s = s % n
    if s == 0:
        return x
    return pltpu.roll(x, (-sign * s) % n, axis=0)


# ------------------------------ Pallas kernels ---------------------------------

def _conv1x1_bn_kernel(x_ref, w_ref, b_ref, o_ref):
    """1x1 conv + folded BN (no ReLU yet), computed directly in NCHW layout.
    x_ref: (1, Cin, S) f32   one image, H*W flattened into S (lane dim)
    w_ref: (Cout, Cin) bf16  BN scale folded into the weights
    b_ref: (Cout, 1)   f32   folded BN bias
    o_ref: (1, Cout, S) f32  pre-activation (ReLU happens after the resize)
    """
    cin, s = x_ref.shape[1], x_ref.shape[2]
    co = w_ref.shape[0]
    x = x_ref[...].reshape(cin, s).astype(jnp.bfloat16)
    y = jnp.dot(w_ref[...], x, preferred_element_type=jnp.float32)
    o_ref[...] = (y + b_ref[...]).reshape(1, co, s)


def _fused_block_kernel(c4_ref, f3_ref, f2_ref, w1_ref, b1_ref, w2_ref, b2_ref,
                        o_ref, x0_ref, *, h, w, roll_sign):
    """FeatureFused epilogue (ReLU + concat) fused with BOTH 3x3 conv+BN+ReLU
    blocks, one image per grid step.

    The 3x3 convs never materialize an im2col or a halo-padded buffer: each
    tap (kh, kw) is a rotation of the dense (H*W, Cin) block by dh*W + dw rows
    (XLU), an edge mask (VALU), and an (H*W, Cin) x (Cin, 256) MXU matmul with
    f32 accumulation; bias-add + ReLU form the epilogue.
    """
    hw = h * w
    c4c = c4_ref.shape[-1]
    ic = f3_ref.shape[-1]
    cout = o_ref.shape[-1]

    # torch.cat([c4, conv3(c3), conv2(c2)], dim=1), assembled once in VMEM.
    x0_ref[:, 0:c4c] = c4_ref[...].reshape(hw, c4c)
    x0_ref[:, c4c:c4c + ic] = jnp.maximum(f3_ref[...].reshape(hw, ic), 0.0)
    x0_ref[:, c4c + ic:c4c + 2 * ic] = jnp.maximum(f2_ref[...].reshape(hw, ic), 0.0)
    x0 = x0_ref[...]

    # Per-row (h, w) coordinates for the boundary masks (padding=1 zeros).
    row = lax.broadcasted_iota(jnp.int32, (hw, 1), 0)
    rh = row // w
    rw = row - rh * w

    def conv3x3(x, w9_ref):
        co = w9_ref.shape[-1]
        acc = jnp.zeros((hw, co), jnp.float32)
        for kh in range(3):
            dh = kh - 1
            for kw in range(3):
                dw = kw - 1
                xt = _shift_rows(x, dh * w + dw, hw, roll_sign)
                conds = []
                if dh == -1:
                    conds.append(rh >= 1)
                if dh == 1:
                    conds.append(rh < h - 1)
                if dw == -1:
                    conds.append(rw >= 1)
                if dw == 1:
                    conds.append(rw < w - 1)
                if conds:
                    ok = conds[0]
                    for c in conds[1:]:
                        ok = ok & c
                    xt = xt * ok.astype(xt.dtype)
                acc = acc + jnp.dot(xt.astype(jnp.bfloat16),
                                    w9_ref[kh * 3 + kw],
                                    preferred_element_type=jnp.float32)
        return acc

    x1 = jnp.maximum(conv3x3(x0, w1_ref) + b1_ref[...], 0.0)     # (hw, 256) f32
    y = jnp.maximum(conv3x3(x1, w2_ref) + b2_ref[...], 0.0)      # (hw, 256) f32
    o_ref[...] = y.reshape(1, hw, cout)


# -------------------------------- wrappers --------------------------------------

def conv1x1_bn(x_nchw, wt, scale, bias):
    """Per-image 1x1 conv with BN scale/bias folded (no ReLU), NCHW layout, so
    the big c2/c3 inputs are read straight from HBM with no transpose."""
    n, cin, hh, ww = x_nchw.shape
    s = hh * ww
    co = wt.shape[0]
    wm = (wt[:, :, 0, 0] * scale[:, None]).astype(jnp.bfloat16)
    out = pl.pallas_call(
        _conv1x1_bn_kernel,
        out_shape=jax.ShapeDtypeStruct((n, co, s), jnp.float32),
        grid=(n,),
        in_specs=[
            pl.BlockSpec((1, cin, s), lambda b: (b, 0, 0)),
            pl.BlockSpec((co, cin), lambda b: (0, 0)),
            pl.BlockSpec((co, 1), lambda b: (0, 0)),
        ],
        out_specs=pl.BlockSpec((1, co, s), lambda b: (b, 0, 0)),
        compiler_params=pltpu.CompilerParams(
            dimension_semantics=("parallel",)),
    )(x_nchw.reshape(n, cin, s), wm, bias.reshape(co, 1))
    return out.reshape(n, co, hh, ww)


def fused_block(c4_rows, f3_rows, f2_rows, w1, b1, w2, b2, h, w):
    """ReLU+concat (FeatureFused epilogue) + two 3x3 conv/BN/ReLU in ONE call."""
    n, hw, c4c = c4_rows.shape
    ic = f3_rows.shape[-1]
    cin1 = c4c + 2 * ic
    cout = w2.shape[-1]
    sign = _ROLL_SIGN if _ROLL_SIGN is not None else 1
    kernel = functools.partial(_fused_block_kernel, h=h, w=w, roll_sign=sign)
    return pl.pallas_call(
        kernel,
        out_shape=jax.ShapeDtypeStruct((n, hw, cout), jnp.float32),
        grid=(n,),
        in_specs=[
            pl.BlockSpec((1, hw, c4c), lambda b: (b, 0, 0)),
            pl.BlockSpec((1, hw, ic), lambda b: (b, 0, 0)),
            pl.BlockSpec((1, hw, ic), lambda b: (b, 0, 0)),
            pl.BlockSpec((9, cin1, cout), lambda b: (0, 0, 0)),
            pl.BlockSpec((1, cout), lambda b: (0, 0)),
            pl.BlockSpec((9, cout, cout), lambda b: (0, 0, 0)),
            pl.BlockSpec((1, cout), lambda b: (0, 0)),
        ],
        out_specs=pl.BlockSpec((1, hw, cout), lambda b: (b, 0, 0)),
        scratch_shapes=[pltpu.VMEM((hw, cin1), jnp.float32)],
        compiler_params=pltpu.CompilerParams(
            dimension_semantics=("parallel",),
            # explicit budget: safe on v5e/v6e (128 MiB) and v7x (64 MiB phys).
            vmem_limit_bytes=32 * 1024 * 1024),
    )(c4_rows, f3_rows, f2_rows, w1, b1.reshape(1, cout), w2, b2.reshape(1, cout))


# -------------------------------- JAX glue ---------------------------------------

def _interp_matrix(out_size, in_size):
    """Row-stochastic matrix implementing 1-D bilinear, align_corners=True."""
    if out_size > 1:
        src = jnp.arange(out_size, dtype=jnp.float32) * (in_size - 1) / (out_size - 1)
    else:
        src = jnp.zeros((out_size,), jnp.float32)
    lo = jnp.clip(jnp.floor(src).astype(jnp.int32), 0, in_size - 1)
    hi = jnp.clip(lo + 1, 0, in_size - 1)
    frac = src - lo.astype(jnp.float32)
    rows = jnp.arange(out_size)
    mat = jnp.zeros((out_size, in_size), jnp.float32)
    mat = mat.at[rows, lo].add(1.0 - frac)
    mat = mat.at[rows, hi].add(frac)
    return mat


def bilinear_resize_nhwc(x_nchw, out_h, out_w):
    """NCHW in -> NHWC out, bilinear, align_corners=True (rows sum to 1).
    Only ever applied to the tiny 48-channel tensors, so 'highest' is cheap."""
    _, _, in_h, in_w = x_nchw.shape
    mh = _interp_matrix(out_h, in_h)
    mw = _interp_matrix(out_w, in_w)
    return jnp.einsum('oh,nchw,pw->nopc', mh, x_nchw, mw, precision='highest')


def bilinear_resize_nchw(x_nchw, out_h, out_w):
    _, _, in_h, in_w = x_nchw.shape
    mh = _interp_matrix(out_h, in_h)
    mw = _interp_matrix(out_w, in_w)
    return jnp.einsum('oh,nchw,pw->ncop', mh, x_nchw, mw, precision='highest')


def fold_bn(gamma, beta, mean, var, eps=1e-5):
    scale = gamma / jnp.sqrt(var + eps)
    bias = beta - mean * scale
    return scale, bias


def _w3x3(wt, scale):
    # (Cout, Cin, 3, 3) -> (9, Cin, Cout), tap t = kh*3+kw, BN scale folded, bf16.
    w = jnp.transpose(wt, (2, 3, 1, 0)).reshape(9, wt.shape[1], wt.shape[0])
    return (w * scale[None, None, :]).astype(jnp.bfloat16)


# ------------------------------- parameters --------------------------------------

def init_params(key, c4_channels):
    in_channels = c4_channels + 48 + 48  # cat([c4, conv3(c3)=48, conv2(c2)=48])
    ks = jax.random.split(key, 4)

    def conv_w(k, cout, cin, kh, kw):
        fan_in = cin * kh * kw
        return jax.random.normal(k, (cout, cin, kh, kw), jnp.float32) / jnp.sqrt(fan_in)

    def bn_p(c, salt):
        i = jnp.arange(c, dtype=jnp.float32)
        return dict(
            gamma=1.0 + 0.1 * jnp.sin(i + salt),
            beta=0.05 * jnp.cos(0.5 * i + salt),
            mean=0.01 * jnp.sin(0.3 * i + salt),
            var=1.0 + 0.1 * jnp.cos(0.7 * i + salt) ** 2,
        )

    return dict(
        conv2_w=conv_w(ks[0], 48, 512, 1, 1),   bn2=bn_p(48, 0.0),
        conv3_w=conv_w(ks[1], 48, 1024, 1, 1),  bn3=bn_p(48, 1.0),
        block1_w=conv_w(ks[2], 256, in_channels, 3, 3), bnb1=bn_p(256, 2.0),
        block2_w=conv_w(ks[3], 256, 256, 3, 3),         bnb2=bn_p(256, 3.0),
    )


# ------------------------- _DUHead forward (Pallas) --------------------------------

def du_head_forward(params, c2, c3, c4):
    n, c4c, h, w = c4.shape

    s2, b2 = fold_bn(**params['bn2'])
    s3, b3 = fold_bn(**params['bn3'])
    sb1, bb1 = fold_bn(**params['bnb1'])
    sb2, bb2 = fold_bn(**params['bnb2'])

    # FeatureFused, restructured (exact): 1x1 conv + folded BN at native c2/c3
    # resolution (512/1024 -> 48 channels), THEN the align_corners=True bilinear
    # resize (interp weights sum to 1 and a 1x1 conv is per-pixel linear, so the
    # two commute); ReLU is applied inside the fused block kernel.
    p2 = conv1x1_bn(c2, params['conv2_w'], s2, b2)          # (n, 48, h2, w2)
    p3 = conv1x1_bn(c3, params['conv3_w'], s3, b3)          # (n, 48, h3, w3)
    f2 = bilinear_resize_nhwc(p2, h, w).reshape(n, h * w, -1)
    f3 = bilinear_resize_nhwc(p3, h, w).reshape(n, h * w, -1)
    c4_rows = jnp.transpose(c4, (0, 2, 3, 1)).reshape(n, h * w, c4c)

    # One Pallas call: ReLU + concat + 3x3 conv/BN/ReLU + 3x3 conv/BN/ReLU.
    out_rows = fused_block(
        c4_rows, f3, f2,
        _w3x3(params['block1_w'], sb1), bb1,
        _w3x3(params['block2_w'], sb2), bb2, h, w)           # (n, h*w, 256)
    return jnp.transpose(out_rows.reshape(n, h, w, -1), (0, 3, 1, 2))


# ----------------------------- pure-JAX reference ----------------------------------

def ref_forward(params, c2, c3, c4):
    def conv(x, wt, pad):
        return lax.conv_general_dilated(
            x, wt, (1, 1), pad, dimension_numbers=('NCHW', 'OIHW', 'NCHW'),
            precision=lax.Precision.HIGHEST)

    def bn_relu(x, p):
        s, b = fold_bn(**p)
        return jnp.maximum(x * s[None, :, None, None] + b[None, :, None, None], 0.0)

    n, _, h, w = c4.shape
    c2r = bilinear_resize_nchw(c2, h, w)
    c3r = bilinear_resize_nchw(c3, h, w)
    f2 = bn_relu(conv(c2r, params['conv2_w'], 'VALID'), params['bn2'])
    f3 = bn_relu(conv(c3r, params['conv3_w'], 'VALID'), params['bn3'])
    fused = jnp.concatenate([c4, f3, f2], axis=1)
    x1 = bn_relu(conv(fused, params['block1_w'], ((1, 1), (1, 1))), params['bnb1'])
    x2 = bn_relu(conv(x1, params['block2_w'], ((1, 1), (1, 1))), params['bnb2'])
    return x2


# ------------------------------------- main -----------------------------------------

if __name__ == "__main__":
    key = jax.random.PRNGKey(0)
    k_c2, k_c3, k_c4, k_p = jax.random.split(key, 4)

    n = 2
    c4_channels = 32                       # in_channels = 32 + 48 + 48 = 128
    c2 = jax.random.normal(k_c2, (n, 512, 16, 16), jnp.float32)
    c3 = jax.random.normal(k_c3, (n, 1024, 12, 12), jnp.float32)
    c4 = jax.random.normal(k_c4, (n, c4_channels, 8, 8), jnp.float32)
    params = init_params(k_p, c4_channels)

    detect_roll_sign()                     # eager probe, before any jit tracing

    out = jax.jit(du_head_forward)(params, c2, c3, c4)
    out = jax.block_until_ready(out)
    assert out.shape == (n, 256, 8, 8), out.shape

    ref = ref_forward(params, c2, c3, c4)
    # bf16 MXU operands (f32 accumulation/epilogue) vs a pure-f32 reference.
    err = float(jnp.max(jnp.abs(out - ref)))
    assert jnp.allclose(out, ref, rtol=2e-2, atol=2e-2), f"max abs err = {err}"

    print("KERNEL_OK")
</pallas_src>

<mosaic_0001>
module attributes {stable_mosaic.version = 11 : i64} {
  func.func @_probe_roll_kernel(%arg0: memref<8x128xi32, #tpu.memory_space<vmem>>, %arg1: memref<8x128xi32, #tpu.memory_space<vmem>>) attributes {dimension_semantics = [], scalar_prefetch = 0 : i64, scratch_operands = 0 : i64, tpu.core_type = #tpu.core_type<tc>} {
    %c0 = arith.constant 0 : index
    %c0_0 = arith.constant 0 : index
    %0 = vector.load %arg0[%c0, %c0_0] : memref<8x128xi32, #tpu.memory_space<vmem>>, vector<8x128xi32>
    %c1_i32 = arith.constant 1 : i32
    %1 = tpu.dynamic_rotate %0 by %c1_i32 dim 0 : vector<8x128xi32>, i32 -> vector<8x128xi32>
    %c0_1 = arith.constant 0 : index
    %c0_2 = arith.constant 0 : index
    %2 = vector.load %arg1[%c0_1, %c0_2] : memref<8x128xi32, #tpu.memory_space<vmem>>, vector<8x128xi32>
    tpu.vector_store %arg1[%c0_1, %c0_2], %1 {strides = array<i32>} : memref<8x128xi32, #tpu.memory_space<vmem>>, vector<8x128xi32>,
    return
  }
}

</mosaic_0001>

<llo_original>
// kernel: tpu_custom_call.1
$region0: #{tpu_custom_call.1}
  #allocation0 [shape = 'u32[]', space=smem, size = 0x4, offset = 0x4, fixed_abs, tag = 'smem constant byte address 0x4 - core index']
  #allocation1 [shape = 'u32[144,128]{1,0:T(1,128)}', space=vmem, size = 0x12000, scoped, tag = 'internal scratch']
  %s0 = inlined_call_operand.hbm [shape: s32[8,128], index: 0, kind: input, shape index: {}]
  %s1 = inlined_call_operand.hbm [shape: s32[8,128], index: 1, kind: output, shape index: {}]
  %s2 = sld [smem:[#allocation0]]
  $region18: #{tpu_custom_call.1} parent=0
    _
  %s4 = ssub.s32 1, %s2
  %s5 = scalar_select 0, %s4, %s2
  $region1: #{tpu_custom_call.1} parent=0
    #allocation2 [shape = 'u8[4096]{0}', space=vmem, size = 0x1000, scoped, tag = 'input window, operand 0, single buffered']
    #allocation3 [shape = 's32[1]{0}', space=sflag, size = 0x4, scoped, tag = 'scoped memory for tpu_custom_call.1']
    #allocation4 [shape = 's32[1]{0}', space=sflag, size = 0x4, scoped, tag = 'scoped memory for tpu_custom_call.1']
    #allocation5 [shape = 'u8[4096]{0}', space=vmem, size = 0x1000, scoped, tag = 'output window, operand 0, single buffered']
    %6 = vsyncpa [#allocation3], 0
    %7 = vsyncpa [#allocation4], 0
    // Predicated region
    $region2: #{tpu_custom_call.1} parent=1 // pred_check
      _
    $region3: #{tpu_custom_call.1} parent=1 // pred_check_branch
      %9 = sbr.rel (0) target = $region5
    $region4: #{tpu_custom_call.1} parent=1 // pred_region
      %s11 = ssub.s32 128, 128
      %12 = vsyncadd [#allocation3], %s11
      %s14 = sshll.u32 [#allocation2], 4
      %s15 = int_to_ptr.vmem [resolvable:$true] %s14
      %17 = dma.hbm_to_vmem [thread:$0]  %s0, 128, %s15, [#allocation3]
    $region5: #{tpu_custom_call.1} parent=1 // pred_fallthru
      _
    // Predicated region
    $region6: #{tpu_custom_call.1} parent=1 // pred_check
      _
    $region7: #{tpu_custom_call.1} parent=1 // pred_check_branch
      %19 = sbr.rel (0) target = $region9
    $region8: #{tpu_custom_call.1} parent=1 // pred_region
      %20 = dma.done [#allocation3], 128
    $region9: #{tpu_custom_call.1} parent=1 // pred_fallthru
      _
    %v21 = vld [vmem:[#allocation2] sm:$0xff]
    %v22 = vrot.slane %v21, 7
    %23 = vst [vmem:[#allocation5] sm:$0xff] %v22
    // Predicated region
    $region10: #{tpu_custom_call.1} parent=1 // pred_check
      _
    $region11: #{tpu_custom_call.1} parent=1 // pred_check_branch
      %25 = sbr.rel (0) target = $region13
    $region12: #{tpu_custom_call.1} parent=1 // pred_region
      %s27 = ssub.s32 128, 128
      %28 = vsyncadd [#allocation4], %s27
      %s30 = sshll.u32 [#allocation5], 4
      %s31 = int_to_ptr.vmem [resolvable:$true] %s30
      %33 = dma.vmem_to_hbm [thread:$0]  %s31, 128, %s1, [#allocation4]
    $region13: #{tpu_custom_call.1} parent=1 // pred_fallthru
      _
    // Predicated region
    $region14: #{tpu_custom_call.1} parent=1 // pred_check
      _
    $region15: #{tpu_custom_call.1} parent=1 // pred_check_branch
      %35 = sbr.rel (0) target = $region17
    $region16: #{tpu_custom_call.1} parent=1 // pred_region
      %36 = dma.done [#allocation4], 128
    $region17: #{tpu_custom_call.1} parent=1 // pred_fallthru
      _
    %37 = vsyncpa [#allocation3], 1
    %38 = vsyncpa [#allocation4], 1

</llo_original>
